<compile_context>
chip_gen: v7x
topology: tpu7x:2x2x1
jax: 0.10.0
libtpu: 0.0.40
codegen_flags: <defaults>
</compile_context>

<pallas_src>
import functools

import jax
import jax.numpy as jnp
import numpy as np
from jax.experimental import pallas as pl
from jax.experimental.pallas import tpu as pltpu

_NEG_BIG = -1e30  # finite "-inf" used to mask invalid vocab lanes before exp()


def _round_up(x, m):
    return ((x + m - 1) // m) * m


# ----------------------------------------------------------------------------
# Kernel 1: ContrastiveHeadAvg  (masked avg pool over S tiles -> out_proj -> sigmoid)
# ----------------------------------------------------------------------------
def _contrastive_head_kernel(h_ref, m_ref, w_ref, b_ref, o_ref,
                             sum_ref, cnt_ref, *, seq_len):
    # h_ref : (tb, ts, D) native dtype, m_ref : (tb, ts, 1) f32 in {0,1}
    # w_ref : (D, D) f32 input-major (y = x @ W), b_ref : (1, D) f32
    s_idx = pl.program_id(1)

    @pl.when(s_idx == 0)
    def _init():
        sum_ref[...] = jnp.zeros_like(sum_ref)
        cnt_ref[...] = jnp.zeros_like(cnt_ref)

    h = h_ref[...].astype(jnp.float32)                  # cast in-kernel (HBM stays native)
    m = m_ref[...].astype(jnp.float32)                  # (tb, ts, 1)
    ts = h.shape[1]

    # Mask sequence positions beyond S (ragged last S tile): OOB block data is
    # undefined, so force both mask and hidden contributions to exactly zero.
    pos = s_idx * ts + jax.lax.broadcasted_iota(jnp.int32, m.shape, 1)
    m = jnp.where(pos < seq_len, m, 0.0)
    hm = jnp.where(m != 0.0, h, 0.0)                    # == masked_fill(mask==0, 0)

    sum_ref[...] += jnp.sum(hm, axis=1)                 # (tb, D)
    cnt_ref[...] += jnp.sum(m, axis=1)                  # (tb, 1)

    @pl.when(s_idx == pl.num_programs(1) - 1)
    def _finalize():
        # Exact divide (runs once per batch tile, not on the hot path).
        # NOTE: an all-zero mask row gives 0/0 -> NaN, same as the PyTorch code.
        pooled = sum_ref[...] / cnt_ref[...]
        proj = jnp.dot(pooled, w_ref[...],
                       preferred_element_type=jnp.float32) + b_ref[...]
        o_ref[...] = (1.0 / (1.0 + jnp.exp(-proj))).astype(o_ref.dtype)


def contrastive_head_avg(hidden_states, masks, out_proj_w, out_proj_b,
                         *, tb=None, ts=None):
    """sigmoid(avg_pool(out_proj(hidden_states), masks)).

    `out_proj_w` is input-major [D_in, D_out]; pass the transpose of a PyTorch
    nn.Linear weight.  Dropout in the reference module is never applied in
    forward() so it is omitted.
    """
    B, S, D = hidden_states.shape
    if masks.ndim == 2:
        masks = masks[:, :, None]

    if ts is None:
        ts = S if S <= 512 else 512                     # S tile (multiple of 8 or == S)
    assert ts == S or ts % 8 == 0

    itemsize = jnp.dtype(hidden_states.dtype).itemsize
    if tb is None:
        # tb must be a multiple of 8 or equal B (output block sublane rule);
        # keep the (tb, ts, D) block under ~8 MiB and prefer >= 2 batch tiles.
        budget = 8 * 1024 * 1024
        cands = [d for d in range(1, B + 1)
                 if B % d == 0 and (d % 8 == 0 or d == B)
                 and d * ts * D * itemsize <= budget]
        proper = [d for d in cands if B // d >= 2]
        tb = max(proper) if proper else (max(cands) if cands else B)
    assert B % tb == 0 and (tb % 8 == 0 or tb == B)

    m = masks.astype(jnp.float32)
    w = out_proj_w.astype(jnp.float32)
    b = out_proj_b.astype(jnp.float32).reshape(1, D)

    kernel = functools.partial(_contrastive_head_kernel, seq_len=S)
    out = pl.pallas_call(
        kernel,
        out_shape=jax.ShapeDtypeStruct((B, D), hidden_states.dtype),
        grid=(B // tb, pl.cdiv(S, ts)),
        in_specs=[
            pl.BlockSpec((tb, ts, D), lambda i, s: (i, s, 0)),   # activation chunk
            pl.BlockSpec((tb, ts, 1), lambda i, s: (i, s, 0)),   # mask chunk
            pl.BlockSpec((D, D), lambda i, s: (0, 0)),
            pl.BlockSpec((1, D), lambda i, s: (0, 0)),
        ],
        out_specs=pl.BlockSpec((tb, D), lambda i, s: (i, 0)),    # lane-dense 2-D output
        scratch_shapes=[
            pltpu.VMEM((tb, D), jnp.float32),   # masked sum accumulator
            pltpu.VMEM((tb, 1), jnp.float32),   # mask-count accumulator
        ],
        compiler_params=pltpu.CompilerParams(
            dimension_semantics=("parallel", "arbitrary")),
    )(hidden_states, m, w, b)
    return out


# ----------------------------------------------------------------------------
# Kernel 2: fused  gumbel_softmax(logits, dim=-1) @ shared.weight
#           (flash-style online softmax over V tiles, bf16 weight streaming)
# ----------------------------------------------------------------------------
def _soft_embed_kernel(*refs, tau, vocab, tk, has_noise):
    if has_noise:
        logits_ref, noise_ref, w_ref, out_ref, m_ref, l_ref, acc_ref = refs
    else:
        logits_ref, w_ref, out_ref, m_ref, l_ref, acc_ref = refs
        noise_ref = None

    k = pl.program_id(1)

    @pl.when(k == 0)
    def _init():
        m_ref[...] = jnp.full(m_ref.shape, _NEG_BIG, dtype=jnp.float32)
        l_ref[...] = jnp.zeros(l_ref.shape, dtype=jnp.float32)
        acc_ref[...] = jnp.zeros(acc_ref.shape, dtype=jnp.float32)

    s = logits_ref[...].astype(jnp.float32)              # (tq, tk)
    if has_noise:
        s = s + noise_ref[...].astype(jnp.float32)        # Gumbel(0,1) noise

    # Mask vocab lanes past V (ragged last V tile handled in-kernel; the big
    # [N, V] logits are never padded in HBM).  Padded weight rows are zero.
    lane = jax.lax.broadcasted_iota(jnp.int32, s.shape, 1)
    s = jnp.where(k * tk + lane < vocab, s, _NEG_BIG)
    s = s * (1.0 / tau)

    # Online softmax across the V (reduction) grid axis, fused with @ W.
    m_prev = m_ref[...]
    m_new = jnp.maximum(m_prev, jnp.max(s, axis=-1, keepdims=True))
    alpha = jnp.exp(m_prev - m_new)
    p = jnp.exp(s - m_new)                                # unnormalized probs (tq, tk)
    l_ref[...] = alpha * l_ref[...] + jnp.sum(p, axis=-1, keepdims=True)
    acc_ref[...] = alpha * acc_ref[...] + jnp.dot(
        p.astype(w_ref.dtype), w_ref[...],                # bf16 x bf16 on the MXU
        preferred_element_type=jnp.float32)
    m_ref[...] = m_new

    @pl.when(k == pl.num_programs(1) - 1)
    def _finalize():
        # Exact divide: runs once per row tile, so no need for approx reciprocal.
        out_ref[...] = (acc_ref[...] / l_ref[...]).astype(out_ref.dtype)


def gumbel_soft_embed(logits, shared_weight, *, key=None, tau=1.0,
                      add_noise=True, tq=512, tk=1024):
    """Fused  gumbel_softmax(logits, dim=-1) @ shared_weight  ->  [B, T, D].

    The [V, D] embedding weight is streamed over V tiles in bf16 (never held
    resident in VMEM), the softmax is computed online, and the [B*T, D] result
    is written to HBM exactly once per row tile.  The original module uses
    hard=False (soft) gumbel_softmax with tau=1.
    """
    # TODO(synk): a hard (straight-through) gumbel variant would be better
    # served by argmax + row gather instead of the dense matmul.
    B, T, V = logits.shape
    Vw, D = shared_weight.shape
    assert V == Vw
    N = B * T

    tq = min(tq, _round_up(N, 8))
    tk = min(tk, _round_up(V, 128))
    assert tq % 8 == 0 and tk % 128 == 0

    n_i = pl.cdiv(N, tq)
    n_k = pl.cdiv(V, tk)
    v_pad = n_k * tk

    lf = logits.reshape(N, V)                             # native dtype; cast in kernel

    # bf16 weight streaming: halves the dominant HBM cost (re-streaming V*D
    # bytes per row tile) and uses the native bf16 MXU path.  Only the small
    # [V, D] weight is padded (zero rows contribute nothing).
    w = shared_weight.astype(jnp.bfloat16)
    if v_pad != V:
        w = jnp.pad(w, ((0, v_pad - V), (0, 0)))

    inputs = [lf]
    in_specs = [pl.BlockSpec((tq, tk), lambda i, k: (i, k))]
    if add_noise:
        if key is None:
            raise ValueError("add_noise=True requires a jax.random key")
        # TODO(synk): generate Gumbel noise with the in-kernel TPU PRNG
        # (pltpu.prng_seed / prng_random_bits) to skip this [N, V] HBM stream;
        # kept host-side so the kernel also runs under interpret mode, where
        # the TPU PRNG primitives do not lower.
        g = jax.random.gumbel(key, (B, T, V), dtype=jnp.float32).reshape(N, V)
        inputs.append(g)
        in_specs.append(pl.BlockSpec((tq, tk), lambda i, k: (i, k)))
    inputs.append(w)
    in_specs.append(pl.BlockSpec((tk, D), lambda i, k: (k, 0)))   # streamed weight tile

    # VMEM budget: double-buffered logits (+noise) and bf16 weight tiles,
    # output tile, and f32 scratch; cap at 64 MiB so v7x stays safe.
    vmem_need = (2 * tq * tk * 4 * (2 if add_noise else 1)
                 + 2 * tk * D * 2
                 + 2 * tq * D * 4
                 + tq * D * 4 + 2 * tq * 4)
    vmem_limit = int(min(max(vmem_need * 3 // 2, 32 * 1024 * 1024),
                         64 * 1024 * 1024))

    kernel = functools.partial(_soft_embed_kernel, tau=float(tau), vocab=V,
                               tk=tk, has_noise=bool(add_noise))
    out = pl.pallas_call(
        kernel,
        out_shape=jax.ShapeDtypeStruct((N, D), shared_weight.dtype),
        grid=(n_i, n_k),                                   # V (reduction) axis last
        in_specs=in_specs,
        out_specs=pl.BlockSpec((tq, D), lambda i, k: (i, 0)),
        scratch_shapes=[
            pltpu.VMEM((tq, 1), jnp.float32),   # running max
            pltpu.VMEM((tq, 1), jnp.float32),   # running denominator
            pltpu.VMEM((tq, D), jnp.float32),   # f32 output accumulator
        ],
        compiler_params=pltpu.CompilerParams(
            dimension_semantics=("parallel", "arbitrary"),
            vmem_limit_bytes=vmem_limit),
    )(*inputs)
    return out.reshape(B, T, D)


# ----------------------------------------------------------------------------
# Self-test
# ----------------------------------------------------------------------------
if __name__ == "__main__":
    root = jax.random.PRNGKey(0)
    k1, k2, k3, k4, k5, k6 = jax.random.split(root, 6)

    # ---- ContrastiveHeadAvg -------------------------------------------------
    B, S, D = 4, 14, 64                     # S deliberately NOT a multiple of the S tile
    hidden = jax.random.normal(k1, (B, S, D), dtype=jnp.float32)
    lengths = jnp.array([S, 9, 5, 12], dtype=jnp.int32)
    masks = (jnp.arange(S)[None, :] < lengths[:, None]).astype(jnp.float32)
    w1 = jax.random.normal(k2, (D, D), dtype=jnp.float32) / jnp.sqrt(D)
    b1 = 0.1 * jax.random.normal(k3, (D,), dtype=jnp.float32)

    head_out = jax.block_until_ready(
        contrastive_head_avg(hidden, masks, w1, b1, ts=8))   # 2 S tiles, ragged tail

    proj_ref = hidden @ w1 + b1             # reference follows the PyTorch order
    pooled_ref = (proj_ref * masks[:, :, None]).sum(1) / masks.sum(1, keepdims=True)
    head_ref = jax.nn.sigmoid(pooled_ref)
    np.testing.assert_allclose(np.asarray(head_out), np.asarray(head_ref),
                               rtol=1e-2, atol=1e-2)

    # ---- gumbel_softmax @ shared.weight ------------------------------------
    Bt, T, V, De = 2, 8, 600, 128           # V deliberately NOT a multiple of 128
    logits = jax.random.normal(k4, (Bt, T, V), dtype=jnp.float32)
    shared_w = jax.random.normal(k5, (V, De), dtype=jnp.float32)
    w_bf16_f32 = shared_w.astype(jnp.bfloat16).astype(jnp.float32)

    # Noise-free path equals plain softmax(logits) @ W -> exact reference check
    # of the fused online-softmax + streamed bf16 weight matmul (incl. the
    # in-kernel V-remainder masking).
    out_soft = jax.block_until_ready(
        gumbel_soft_embed(logits, shared_w, add_noise=False))
    ref_soft = jax.nn.softmax(logits, axis=-1) @ w_bf16_f32
    np.testing.assert_allclose(np.asarray(out_soft), np.asarray(ref_soft),
                               rtol=2e-2, atol=3e-3)

    # Full Gumbel path: noise comes from jax.random.gumbel(key, ...), so we can
    # check against a dense reference that uses the identical noise.
    out_g = jax.block_until_ready(
        gumbel_soft_embed(logits, shared_w, key=k6, tau=1.0, add_noise=True))
    g = jax.random.gumbel(k6, (Bt, T, V), dtype=jnp.float32)
    ref_g = jax.nn.softmax(logits + g, axis=-1) @ w_bf16_f32
    assert out_g.shape == (Bt, T, De)
    assert bool(jnp.all(jnp.isfinite(out_g)))
    np.testing.assert_allclose(np.asarray(out_g), np.asarray(ref_g),
                               rtol=2e-2, atol=5e-3)

    print("KERNEL_OK")
</pallas_src>

<mosaic_0001>
module attributes {stable_mosaic.version = 11 : i64} {
  func.func @_contrastive_head_kernel(%arg0: i32, %arg1: i32, %arg2: memref<4x8x64xf32, #tpu.memory_space<vmem>>, %arg3: memref<4x8x1xf32, #tpu.memory_space<vmem>>, %arg4: memref<64x64xf32, #tpu.memory_space<vmem>>, %arg5: memref<1x64xf32, #tpu.memory_space<vmem>>, %arg6: memref<4x64xf32, #tpu.memory_space<vmem>>, %arg7: memref<4x64xf32, #tpu.memory_space<vmem>>, %arg8: memref<4x1xf32, #tpu.memory_space<vmem>>) attributes {dimension_semantics = [#tpu.dimension_semantics<parallel>, #tpu.dimension_semantics<arbitrary>], iteration_bounds = array<i64: 1, 2>, scalar_prefetch = 0 : i64, scratch_operands = 2 : i64, tpu.core_type = #tpu.core_type<tc>, window_params = [{transform_indices = @transform_0, window_bounds = array<i64: 4, 8, 64>}, {transform_indices = @transform_1, window_bounds = array<i64: 4, 8, 1>}, {pipeline_mode = #tpu.pipeline_mode<synchronous>, transform_indices = @transform_2, window_bounds = array<i64: 64, 64>}, {pipeline_mode = #tpu.pipeline_mode<synchronous>, transform_indices = @transform_3, window_bounds = array<i64: 1, 64>}, {transform_indices = @transform_4, window_bounds = array<i64: 4, 64>}]} {
    %c0_i32 = arith.constant 0 : i32
    %0 = arith.cmpi eq, %arg1, %c0_i32 : i32
    %1 = arith.extui %0 : i1 to i32
    %c0_i32_0 = arith.constant 0 : i32
    %2 = arith.cmpi ne, %1, %c0_i32_0 : i32
    scf.if %2 {
      %cst_19 = arith.constant 0.000000e+00 : f32
      %30 = vector.broadcast %cst_19 : f32 to vector<4x64xf32>
      %c0_20 = arith.constant 0 : index
      %c0_21 = arith.constant 0 : index
      %31 = vector.load %arg7[%c0_20, %c0_21] : memref<4x64xf32, #tpu.memory_space<vmem>>, vector<4x64xf32>
      tpu.vector_store %arg7[%c0_20, %c0_21], %30 {strides = array<i32>} : memref<4x64xf32, #tpu.memory_space<vmem>>, vector<4x64xf32>,
      %cst_22 = arith.constant 0.000000e+00 : f32
      %32 = vector.broadcast %cst_22 : f32 to vector<4x1xf32>
      %c0_23 = arith.constant 0 : index
      %c0_24 = arith.constant 0 : index
      %33 = vector.load %arg8[%c0_23, %c0_24] : memref<4x1xf32, #tpu.memory_space<vmem>>, vector<4x1xf32>
      tpu.vector_store %arg8[%c0_23, %c0_24], %32 {strides = array<i32>} : memref<4x1xf32, #tpu.memory_space<vmem>>, vector<4x1xf32>,
    } else {
    }
    %c0 = arith.constant 0 : index
    %c0_1 = arith.constant 0 : index
    %c0_2 = arith.constant 0 : index
    %3 = vector.load %arg2[%c0, %c0_1, %c0_2] : memref<4x8x64xf32, #tpu.memory_space<vmem>>, vector<4x8x64xf32>
    %c0_3 = arith.constant 0 : index
    %c0_4 = arith.constant 0 : index
    %c0_5 = arith.constant 0 : index
    %4 = vector.load %arg3[%c0_3, %c0_4, %c0_5] : memref<4x8x1xf32, #tpu.memory_space<vmem>>, vector<4x8x1xf32>
    %c8_i32 = arith.constant 8 : i32
    %5 = arith.muli %arg1, %c8_i32 : i32
    %6 = tpu.iota {dimensions = array<i32: 1>} : vector<4x8x1xi32>
    %7 = vector.broadcast %5 : i32 to vector<4x8x1xi32>
    %8 = arith.addi %7, %6 : vector<4x8x1xi32>
    %c14_i32 = arith.constant 14 : i32
    %9 = vector.broadcast %c14_i32 : i32 to vector<4x8x1xi32>
    %10 = arith.cmpi slt, %8, %9 : vector<4x8x1xi32>
    %cst = arith.constant 0.000000e+00 : f32
    %11 = vector.broadcast %cst : f32 to vector<4x8x1xf32>
    %12 = arith.select %10, %4, %11 : vector<4x8x1xi1>, vector<4x8x1xf32>
    %cst_6 = arith.constant 0.000000e+00 : f32
    %13 = vector.broadcast %cst_6 : f32 to vector<4x8x1xf32>
    %14 = arith.cmpf one, %12, %13 : vector<4x8x1xf32>
    %cst_7 = arith.constant 0.000000e+00 : f32
    %15 = vector.shape_cast %14 : vector<4x8x1xi1> to vector<4x8x1xi1>
    %16 = vector.broadcast %15 : vector<4x8x1xi1> to vector<4x8x64xi1>
    %17 = vector.broadcast %cst_7 : f32 to vector<4x8x64xf32>
    %18 = arith.select %16, %3, %17 : vector<4x8x64xi1>, vector<4x8x64xf32>
    %c0_8 = arith.constant 0 : index
    %c0_9 = arith.constant 0 : index
    %19 = vector.load %arg7[%c0_8, %c0_9] : memref<4x64xf32, #tpu.memory_space<vmem>>, vector<4x64xf32>
    %cst_10 = arith.constant dense<0.000000e+00> : vector<4x64xf32>
    %20 = vector.multi_reduction <add>, %18, %cst_10 [1] : vector<4x8x64xf32> to vector<4x64xf32>
    %21 = arith.addf %19, %20 : vector<4x64xf32>
    %c0_11 = arith.constant 0 : index
    %c0_12 = arith.constant 0 : index
    %22 = vector.load %arg7[%c0_11, %c0_12] : memref<4x64xf32, #tpu.memory_space<vmem>>, vector<4x64xf32>
    tpu.vector_store %arg7[%c0_11, %c0_12], %21 {strides = array<i32>} : memref<4x64xf32, #tpu.memory_space<vmem>>, vector<4x64xf32>,
    %c0_13 = arith.constant 0 : index
    %c0_14 = arith.constant 0 : index
    %23 = vector.load %arg8[%c0_13, %c0_14] : memref<4x1xf32, #tpu.memory_space<vmem>>, vector<4x1xf32>
    %cst_15 = arith.constant dense<0.000000e+00> : vector<4x1xf32>
    %24 = vector.multi_reduction <add>, %12, %cst_15 [1] : vector<4x8x1xf32> to vector<4x1xf32>
    %25 = arith.addf %23, %24 : vector<4x1xf32>
    %c0_16 = arith.constant 0 : index
    %c0_17 = arith.constant 0 : index
    %26 = vector.load %arg8[%c0_16, %c0_17] : memref<4x1xf32, #tpu.memory_space<vmem>>, vector<4x1xf32>
    tpu.vector_store %arg8[%c0_16, %c0_17], %25 {strides = array<i32>} : memref<4x1xf32, #tpu.memory_space<vmem>>, vector<4x1xf32>,
    %c1_i32 = arith.constant 1 : i32
    %27 = arith.cmpi eq, %arg1, %c1_i32 : i32
    %28 = arith.extui %27 : i1 to i32
    %c0_i32_18 = arith.constant 0 : i32
    %29 = arith.cmpi ne, %28, %c0_i32_18 : i32
    scf.if %29 {
      %c0_19 = arith.constant 0 : index
      %c0_20 = arith.constant 0 : index
      %30 = vector.load %arg7[%c0_19, %c0_20] : memref<4x64xf32, #tpu.memory_space<vmem>>, vector<4x64xf32>
      %c0_21 = arith.constant 0 : index
      %c0_22 = arith.constant 0 : index
      %31 = vector.load %arg8[%c0_21, %c0_22] : memref<4x1xf32, #tpu.memory_space<vmem>>, vector<4x1xf32>
      %32 = vector.broadcast %31 : vector<4x1xf32> to vector<4x64xf32>
      %33 = arith.divf %30, %32 : vector<4x64xf32>
      %c0_23 = arith.constant 0 : index
      %c0_24 = arith.constant 0 : index
      %34 = vector.load %arg4[%c0_23, %c0_24] : memref<64x64xf32, #tpu.memory_space<vmem>>, vector<64x64xf32>
      %cst_25 = arith.constant dense<0.000000e+00> : vector<4x64xf32>
      %35 = tpu.matmul %33, %34, %cst_25 {dimension_numbers = #tpu.dot_dimension_numbers<[1], [0], [0], [1], [0, 0, 1, 1], [], []>} : vector<4x64xf32>, vector<64x64xf32>, vector<4x64xf32> -> vector<4x64xf32>
      %c0_26 = arith.constant 0 : index
      %c0_27 = arith.constant 0 : index
      %36 = vector.load %arg5[%c0_26, %c0_27] : memref<1x64xf32, #tpu.memory_space<vmem>>, vector<1x64xf32>
      %37 = vector.broadcast %36 : vector<1x64xf32> to vector<4x64xf32>
      %38 = arith.addf %35, %37 : vector<4x64xf32>
      %cst_28 = arith.constant 0.000000e+00 : f32
      %39 = vector.broadcast %cst_28 : f32 to vector<4x64xf32>
      %40 = arith.subf %39, %38 : vector<4x64xf32>
      %41 = math.exp %40 : vector<4x64xf32>
      %cst_29 = arith.constant 1.000000e+00 : f32
      %42 = vector.broadcast %cst_29 : f32 to vector<4x64xf32>
      %43 = arith.addf %42, %41 : vector<4x64xf32>
      %cst_30 = arith.constant 1.000000e+00 : f32
      %44 = vector.broadcast %cst_30 : f32 to vector<4x64xf32>
      %45 = arith.divf %44, %43 : vector<4x64xf32>
      %c0_31 = arith.constant 0 : index
      %c0_32 = arith.constant 0 : index
      %46 = vector.load %arg6[%c0_31, %c0_32] : memref<4x64xf32, #tpu.memory_space<vmem>>, vector<4x64xf32>
      tpu.vector_store %arg6[%c0_31, %c0_32], %45 {strides = array<i32>} : memref<4x64xf32, #tpu.memory_space<vmem>>, vector<4x64xf32>,
    } else {
    }
    return
  }
  func.func @transform_0(%arg0: i32, %arg1: i32) -> (i32, i32, i32) {
    %c0_i32 = arith.constant 0 : i32
    %c0_i32_0 = arith.constant 0 : i32
    return %arg0, %arg1, %c0_i32 : i32, i32, i32
  }
  func.func @transform_1(%arg0: i32, %arg1: i32) -> (i32, i32, i32) {
    %c0_i32 = arith.constant 0 : i32
    %c0_i32_0 = arith.constant 0 : i32
    return %arg0, %arg1, %c0_i32 : i32, i32, i32
  }
  func.func @transform_2(%arg0: i32, %arg1: i32) -> (i32, i32) {
    %c0_i32 = arith.constant 0 : i32
    %c0_i32_0 = arith.constant 0 : i32
    %c0_i32_1 = arith.constant 0 : i32
    return %c0_i32, %c0_i32_0 : i32, i32
  }
  func.func @transform_3(%arg0: i32, %arg1: i32) -> (i32, i32) {
    %c0_i32 = arith.constant 0 : i32
    %c0_i32_0 = arith.constant 0 : i32
    %c0_i32_1 = arith.constant 0 : i32
    return %c0_i32, %c0_i32_0 : i32, i32
  }
  func.func @transform_4(%arg0: i32, %arg1: i32) -> (i32, i32) {
    %c0_i32 = arith.constant 0 : i32
    %c0_i32_0 = arith.constant 0 : i32
    return %arg0, %c0_i32 : i32, i32
  }
}

</mosaic_0001>

<llo_original>
// kernel: tpu_custom_call.1
$region0: #{tpu_custom_call.1}
  #allocation0 [shape = 'u32[]', space=smem, size = 0x4, offset = 0x4, fixed_abs, tag = 'smem constant byte address 0x4 - core index']
  #allocation1 [shape = 'u32[144,128]{1,0:T(1,128)}', space=vmem, size = 0x12000, scoped, tag = 'internal scratch']
  #allocation2 [shape = 'f32[4,64]{1,0:T(4,128)}', space=vmem, size = 0x800, scoped, tag = 'scratch operand']
  #allocation3 [shape = 'f32[4,1]{1,0:T(4,128)}', space=vmem, size = 0x800, scoped, tag = 'scratch operand']
  %s0 = inlined_call_operand.vmem [shape: f32[4,14,64], index: 0, kind: input, shape index: {}]
  %s1 = inlined_call_operand.vmem [shape: f32[4,14,1], index: 1, kind: input, shape index: {}]
  %s2 = inlined_call_operand.vmem [shape: f32[64,64], index: 2, kind: input, shape index: {}]
  %s3 = inlined_call_operand.vmem [shape: f32[1,64], index: 3, kind: input, shape index: {}]
  %s4 = inlined_call_operand.hbm [shape: f32[4,64], index: 4, kind: output, shape index: {}]
  %s5 = sld [smem:[#allocation0]]
  $region133: #{tpu_custom_call.1} parent=0
    _
  %s7 = ssub.s32 1, %s5
  %s8 = scalar_select 0, %s7, %s5
  $region1: #{tpu_custom_call.1} parent=0
    #allocation4 [shape = 'u8[32768]{0}', space=vmem, size = 0x8000, scoped, tag = 'input window, operand 0']
    #allocation5 [shape = 'u8[32768]{0}', space=vmem, size = 0x8000, scoped, tag = 'input window, operand 1']
    #allocation6 [shape = 'u8[2048]{0}', space=vmem, size = 0x800, scoped, tag = 'output window, operand 0, single buffered']
    #allocation7 [shape = 's32[2]{0}', space=sflag, size = 0x8, scoped, tag = 'scoped memory for tpu_custom_call.1']
    %9 = vsyncpa [#allocation7], 0
    loop: start=0, step=1, limit=4
    $region2: #{tpu_custom_call.1} parent=1 // loop_pre_header
      _
    $region3: #{tpu_custom_call.1} parent=1 // loop_header
      %s11 = sphi 0, %s15
      %p12 = scmp.ge.s32.totalorder %s11, 4
      %s18 = sphi 0, %s30
      %s19 = sphi 0, %s26
      %s20 = sphi 0, %s18
      %s21 = sphi 0, %s19
      %s22 = sphi 0, %s20
      %s23 = sphi 0, %s21
      %s35 = sphi 0, %s37
      %s38 = sphi 0, %s35
      %s39 = sphi 0, %s38
      %s55 = sphi 0, %s39
      %s63 = sphi 0, %s65
      %s66 = sphi 0, %s63
      %s67 = sphi 0, %s66
      %s83 = sphi 0, %s67
      %s87 = sphi 0, %s87
      %s89 = sphi 0, %s87
      %s90 = sphi 0, %s89
      %s104 = sphi 0, %s90
      %s108 = sphi 0, %s108
      %s110 = sphi 0, %s108
      %s111 = sphi 0, %s110
      %s125 = sphi 0, %s111
      %s131 = sphi 0, %s133
      %s134 = sphi 0, %s131
      %s135 = sphi 0, %s134
      %s151 = sphi 0, %s135
    $region4: #{tpu_custom_call.1} parent=1 // loop_header_branch
      %14 = sbr.rel (%p12) target = $region8
    $region5: #{tpu_custom_call.1} parent=1 // loop_body
      %s16 = ssub.s32 %s11, 1
      %s17 = ssub.s32 %s11, 2
      %s24 = sadd.s32 1, %s19
      %p25 = scmp.ge.s32.totalorder %s24, 2
      %s26 = scalar_select %p25, 0, %s24
      %s27 = sadd.s32 1, %s18
      %s28 = scalar_select %p25, %s27, %s18
      %p29 = scmp.ge.s32.totalorder %s28, 1
      %s30 = scalar_select %p29, 0, %s28
      %s31 = ssub.s32 %s18, %s30
      %s32 = ssub.s32 %s19, %s26
      %s33 = sor.u32 %s31, %s32
      %p34 = scmp.eq.s32.totalorder %s33, 0
      %s36 = sadd.s32 %s35, 1
      %s37 = scalar_select %p34, %s35, %s36
      %p40 = pneg %p34
      %p41 = scmp.eq.s32.totalorder %s11, 1
      %p42 = por %p40, %p41
      %p43 = scmp.ne.s32.totalorder %s35, %s38
      %p44 = scmp.eq.s32.totalorder %s11, 0
      %p45 = por %p43, %p44
      %p46 = scmp.ne.s32.totalorder %s35, %s38
      %p47 = scmp.eq.s32.totalorder %s16, 1
      %p48 = por %p46, %p47
      %p49 = scmp.ne.s32.totalorder %s38, %s39
      %p50 = scmp.eq.s32.totalorder %s16, 0
      %p51 = por %p49, %p50
      %p52 = scmp.ne.s32.totalorder %s38, %s39
      %p53 = scmp.eq.s32.totalorder %s17, 1
      %p54 = por %p52, %p53
      %p56 = scmp.ne.s32.totalorder %s39, %s55
      %p57 = scmp.eq.s32.totalorder %s17, 0
      %p58 = por %p56, %p57
      %s59 = ssub.s32 %s18, %s30
      %s60 = ssub.s32 %s19, %s26
      %s61 = sor.u32 %s59, %s60
      %p62 = scmp.eq.s32.totalorder %s61, 0
      %s64 = sadd.s32 %s63, 1
      %s65 = scalar_select %p62, %s63, %s64
      %p68 = pneg %p62
      %p69 = scmp.eq.s32.totalorder %s11, 1
      %p70 = por %p68, %p69
      %p71 = scmp.ne.s32.totalorder %s63, %s66
      %p72 = scmp.eq.s32.totalorder %s11, 0
      %p73 = por %p71, %p72
      %p74 = scmp.ne.s32.totalorder %s63, %s66
      %p75 = scmp.eq.s32.totalorder %s16, 1
      %p76 = por %p74, %p75
      %p77 = scmp.ne.s32.totalorder %s66, %s67
      %p78 = scmp.eq.s32.totalorder %s16, 0
      %p79 = por %p77, %p78
      %p80 = scmp.ne.s32.totalorder %s66, %s67
      %p81 = scmp.eq.s32.totalorder %s17, 1
      %p82 = por %p80, %p81
      %p84 = scmp.ne.s32.totalorder %s67, %s83
      %p85 = scmp.eq.s32.totalorder %s17, 0
      %p86 = por %p84, %p85
      %s88 = sadd.s32 %s87, 1
      %p91 = scmp.eq.s32.totalorder %s11, 1
      %p92 = scmp.ne.s32.totalorder %s87, %s89
      %p93 = scmp.eq.s32.totalorder %s11, 0
      %p94 = por %p92, %p93
      %p95 = scmp.ne.s32.totalorder %s87, %s89
      %p96 = scmp.eq.s32.totalorder %s16, 1
      %p97 = por %p95, %p96
      %p98 = scmp.ne.s32.totalorder %s89, %s90
      %p99 = scmp.eq.s32.totalorder %s16, 0
      %p100 = por %p98, %p99
      %p101 = scmp.ne.s32.totalorder %s89, %s90
      %p102 = scmp.eq.s32.totalorder %s17, 1
      %p103 = por %p101, %p102
      %p105 = scmp.ne.s32.totalorder %s90, %s104
      %p106 = scmp.eq.s32.totalorder %s17, 0
      %p107 = por %p105, %p106
      %s109 = sadd.s32 %s108, 1
      %p112 = scmp.eq.s32.totalorder %s11, 1
      %p113 = scmp.ne.s32.totalorder %s108, %s110
      %p114 = scmp.eq.s32.totalorder %s11, 0
      %p115 = por %p113, %p114
      %p116 = scmp.ne.s32.totalorder %s108, %s110
      %p117 = scmp.eq.s32.totalorder %s16, 1
      %p118 = por %p116, %p117
      %p119 = scmp.ne.s32.totalorder %s110, %s111
      %p120 = scmp.eq.s32.totalorder %s16, 0
      %p121 = por %p119, %p120
      %p122 = scmp.ne.s32.totalorder %s110, %s111
      %p123 = scmp.eq.s32.totalorder %s17, 1
      %p124 = por %p122, %p123
      %p126 = scmp.ne.s32.totalorder %s111, %s125
      %p127 = scmp.eq.s32.totalorder %s17, 0
      %p128 = por %p126, %p127
      %s129 = ssub.s32 %s18, %s30
      %p130 = scmp.eq.s32.totalorder %s129, 0
      %s132 = sadd.s32 %s131, 1
      %s133 = scalar_select %p130, %s131, %s132
      %p136 = pneg %p130
      %p137 = scmp.eq.s32.totalorder %s11, 1
      %p138 = por %p136, %p137
      %p139 = scmp.ne.s32.totalorder %s131, %s134
      %p140 = scmp.eq.s32.totalorder %s11, 0
      %p141 = por %p139, %p140
      %p142 = scmp.ne.s32.totalorder %s131, %s134
      %p143 = scmp.eq.s32.totalorder %s16, 1
      %p144 = por %p142, %p143
      %p145 = scmp.ne.s32.totalorder %s134, %s135
      %p146 = scmp.eq.s32.totalorder %s16, 0
      %p147 = por %p145, %p146
      %p148 = scmp.ne.s32.totalorder %s134, %s135
      %p149 = scmp.eq.s32.totalorder %s17, 1
      %p150 = por %p148, %p149
      %p152 = scmp.ne.s32.totalorder %s135, %s151
      %p153 = scmp.eq.s32.totalorder %s17, 0
      %p154 = por %p152, %p153
      %p155 = scmp.le.s32.totalorder 1, %s11
      %p156 = scmp.lt.s32.totalorder %s11, 3
      %p157 = pnand %p155, %p156
      %p158 = pneg %p157
      // Predicated region
      $region9: #{tpu_custom_call.1} parent=5 // pred_check
        _
      $region10: #{tpu_custom_call.1} parent=5 // pred_check_branch
        %160 = sbr.rel (%p157) target = $region12
      $region11: #{tpu_custom_call.1} parent=5 // pred_region
        %s161 = ssub.s32 %s11, 1
        // Predicated region
        $region13: #{tpu_custom_call.1} parent=11 // pred_check
          %p162 = pneg %p100
        $region14: #{tpu_custom_call.1} parent=11 // pred_check_branch
          %164 = sbr.rel (%p162) target = $region16
        $region15: #{tpu_custom_call.1} parent=11 // pred_region
          _
        $region16: #{tpu_custom_call.1} parent=11 // pred_fallthru
          _
        // Predicated region
        $region17: #{tpu_custom_call.1} parent=11 // pred_check
          %p165 = pneg %p121
        $region18: #{tpu_custom_call.1} parent=11 // pred_check_branch
          %167 = sbr.rel (%p165) target = $region20
        $region19: #{tpu_custom_call.1} parent=11 // pred_region
          _
        $region20: #{tpu_custom_call.1} parent=11 // pred_fallthru
          _
      $region12: #{tpu_custom_call.1} parent=5 // pred_fallthru
        _
      %p168 = scmp.lt.s32.totalorder %s11, 2
      // Predicated region
      $region21: #{tpu_custom_call.1} parent=5 // pred_check
        %p169 = pneg %p168
      $region22: #{tpu_custom_call.1} parent=5 // pred_check_branch
        %171 = sbr.rel (%p169) target = $region24
      $region23: #{tpu_custom_call.1} parent=5 // pred_region
        // Predicated region
        $region25: #{tpu_custom_call.1} parent=23 // pred_check
          %p172 = pneg %p45
        $region26: #{tpu_custom_call.1} parent=23 // pred_check_branch
          %174 = sbr.rel (%p172) target = $region28
        $region27: #{tpu_custom_call.1} parent=23 // pred_region
          %s175 = sand.u32 %s35, 1
          %s176 = sand.u32 %s35, 1
          %s177 = smul.addr %s176, 32
          %s178 = scalar_lea.vmem [#allocation4], %s177
          %s179 = smul.u32 4, %s18
          %s180 = smul.addr %s179, 2
          %s181 = sadd.s32 %s19, %s180
          %s182 = smul.addr %s181, 8
          %s183 = scalar_lea.vmem %s0, %s182
          // Predicated region
          $region29: #{tpu_custom_call.1} parent=27 // pred_check
            _
          $region30: #{tpu_custom_call.1} parent=27 // pred_check_branch
            %185 = sbr.rel (0) target = $region32
          $region31: #{tpu_custom_call.1} parent=27 // pred_region
            // Predicated region
            $region33: #{tpu_custom_call.1} parent=31 // pred_check
              _
            $region34: #{tpu_custom_call.1} parent=31 // pred_check_branch
              %187 = sbr.rel (0) target = $region36
            $region35: #{tpu_custom_call.1} parent=31 // pred_region
              // Predicated region
              $region48: #{tpu_custom_call.1} parent=35 // pred_check
                _
              $region49: #{tpu_custom_call.1} parent=35 // pred_check_branch
                %208 = sbr.rel (0) target = $region51
              $region50: #{tpu_custom_call.1} parent=35 // pred_region
                loop: start=0, step=1, limit=1
                $region52: #{tpu_custom_call.1} parent=50 // loop_pre_header
                  _
                $region53: #{tpu_custom_call.1} parent=50 // loop_header
                  %s210 = sphi 0, %s214
                  %p211 = scmp.ge.s32.totalorder %s210, 1
                  %s215 = sphi %s183, %s183
                  %s216 = sphi %s178, %s178
                $region54: #{tpu_custom_call.1} parent=50 // loop_header_branch
                  %213 = sbr.rel (%p211) target = $region58
                $region55: #{tpu_custom_call.1} parent=50 // loop_body
                  %v217 = vld [vmem:[%s215] sm:$0xff]
                  %218 = vst [vmem:[%s216] sm:$0xff] %v217
                  %v219 = vld [vmem:[%s215 + $0x10] sm:$0xff]
                  %220 = vst [vmem:[%s216 + $0x8] sm:$0xff] %v219
                  %v221 = vld [vmem:[%s215 + $0x20] sm:$0xff]
                  %222 = vst [vmem:[%s216 + $0x10] sm:$0xff] %v221
                  %v223 = vld [vmem:[%s215 + $0x30] sm:$0xff]
                  %224 = vst [vmem:[%s216 + $0x18] sm:$0xff] %v223
                $region56: #{tpu_custom_call.1} parent=50 // loop_footer
                  %s214 = sadd.s32 1, %s210
                $region57: #{tpu_custom_call.1} parent=50 // loop_footer_branch
                  %209 = sbr.rel target = $region53
                $region58: #{tpu_custom_call.1} parent=50 // loop_exit
                  _
              $region51: #{tpu_custom_call.1} parent=35 // pred_fallthru
                _
              // Predicated region
              $region59: #{tpu_custom_call.1} parent=35 // pred_check
                _
              $region60: #{tpu_custom_call.1} parent=35 // pred_check_branch
                %226 = sbr.rel target = $region62
              $region61: #{tpu_custom_call.1} parent=35 // pred_region
                _
              $region62: #{tpu_custom_call.1} parent=35 // pred_fallthru
                _
            $region36: #{tpu_custom_call.1} parent=31 // pred_fallthru
              _
            // Predicated region
            $region37: #{tpu_custom_call.1} parent=31 // pred_check
              _
            $region38: #{tpu_custom_call.1} parent=31 // pred_check_branch
              %189 = sbr.rel target = $region40
            $region39: #{tpu_custom_call.1} parent=31 // pred_region
              loop: start=0, step=1, limit=1
              $region41: #{tpu_custom_call.1} parent=39 // loop_pre_header
                _
              $region42: #{tpu_custom_call.1} parent=39 // loop_header
                %s192 = sphi 0, %s196
                %p193 = scmp.ge.s32.totalorder %s192, 1
                %s197 = sphi %s183, %s183
                %s198 = sphi %s178, %s178
              $region43: #{tpu_custom_call.1} parent=39 // loop_header_branch
                %195 = sbr.rel (%p193) target = $region47
              $region44: #{tpu_custom_call.1} parent=39 // loop_body
                %v199 = vld [vmem:[%s197] sm:$0xff]
                %200 = vst [vmem:[%s198] sm:$0xff] %v199
                %v201 = vld [vmem:[%s197 + $0x10] sm:$0xff]
                %202 = vst [vmem:[%s198 + $0x8] sm:$0xff] %v201
                %v203 = vld [vmem:[%s197 + $0x20] sm:$0xff]
                %204 = vst [vmem:[%s198 + $0x10] sm:$0xff] %v203
                %v205 = vld [vmem:[%s197 + $0x30] sm:$0xff]
                %206 = vst [vmem:[%s198 + $0x18] sm:$0xff] %v205
              $region45: #{tpu_custom_call.1} parent=39 // loop_footer
                %s196 = sadd.s32 1, %s192
              $region46: #{tpu_custom_call.1} parent=39 // loop_footer_branch
                %191 = sbr.rel target = $region42
              $region47: #{tpu_custom_call.1} parent=39 // loop_exit
                _
            $region40: #{tpu_custom_call.1} parent=31 // pred_fallthru
              _
          $region32: #{tpu_custom_call.1} parent=27 // pred_fallthru
            _
          %227 = vnop
        $region28: #{tpu_custom_call.1} parent=23 // pred_fallthru
          _
        // Predicated region
        $region63: #{tpu_custom_call.1} parent=23 // pred_check
          %p228 = pneg %p73
        $region64: #{tpu_custom_call.1} parent=23 // pred_check_branch
          %230 = sbr.rel (%p228) target = $region66
        $region65: #{tpu_custom_call.1} parent=23 // pred_region
          %s231 = sand.u32 %s63, 1
          %s232 = sand.u32 %s63, 1
          %s233 = smul.addr %s232, 32
          %s234 = scalar_lea.vmem [#allocation5], %s233
          %s235 = smul.u32 4, %s18
          %s236 = smul.addr %s235, 2
          %s237 = sadd.s32 %s19, %s236
          %s238 = smul.addr %s237, 8
          %s239 = scalar_lea.vmem %s1, %s238
          // Predicated region
          $region67: #{tpu_custom_call.1} parent=65 // pred_check
            _
          $region68: #{tpu_custom_call.1} parent=65 // pred_check_branch
            %241 = sbr.rel (0) target = $region70
          $region69: #{tpu_custom_call.1} parent=65 // pred_region
            // Predicated region
            $region71: #{tpu_custom_call.1} parent=69 // pred_check
              _
            $region72: #{tpu_custom_call.1} parent=69 // pred_check_branch
              %243 = sbr.rel (0) target = $region74
            $region73: #{tpu_custom_call.1} parent=69 // pred_region
              // Predicated region
              $region86: #{tpu_custom_call.1} parent=73 // pred_check
                _
              $region87: #{tpu_custom_call.1} parent=73 // pred_check_branch
                %264 = sbr.rel (0) target = $region89
              $region88: #{tpu_custom_call.1} parent=73 // pred_region
                loop: start=0, step=1, limit=1
                $region90: #{tpu_custom_call.1} parent=88 // loop_pre_header
                  _
                $region91: #{tpu_custom_call.1} parent=88 // loop_header
                  %s266 = sphi 0, %s270
                  %p267 = scmp.ge.s32.totalorder %s266, 1
                  %s271 = sphi %s239, %s239
                  %s272 = sphi %s234, %s234
                $region92: #{tpu_custom_call.1} parent=88 // loop_header_branch
                  %269 = sbr.rel (%p267) target = $region96
                $region93: #{tpu_custom_call.1} parent=88 // loop_body
                  %v273 = vld [vmem:[%s271] sm:$0xff]
                  %274 = vst [vmem:[%s272] sm:$0xff] %v273
                  %v275 = vld [vmem:[%s271 + $0x10] sm:$0xff]
                  %276 = vst [vmem:[%s272 + $0x8] sm:$0xff] %v275
                  %v277 = vld [vmem:[%s271 + $0x20] sm:$0xff]
                  %278 = vst [vmem:[%s272 + $0x10] sm:$0xff] %v277
                  %v279 = vld [vmem:[%s271 + $0x30] sm:$0xff]
                  %280 = vst [vmem:[%s272 + $0x18] sm:$0xff] %v279
                $region94: #{tpu_custom_call.1} parent=88 // loop_footer
                  %s270 = sadd.s32 1, %s266
                $region95: #{tpu_custom_call.1} parent=88 // loop_footer_branch
                  %265 = sbr.rel target = $region91
                $region96: #{tpu_custom_call.1} parent=88 // loop_exit
                  _
              $region89: #{tpu_custom_call.1} parent=73 // pred_fallthru
                _
              // Predicated region
              $region97: #{tpu_custom_call.1} parent=73 // pred_check
                _
              $region98: #{tpu_custom_call.1} parent=73 // pred_check_branch
                %282 = sbr.rel target = $region100
              $region99: #{tpu_custom_call.1} parent=73 // pred_region
                _
              $region100: #{tpu_custom_call.1} parent=73 // pred_fallthru
                _
            $region74: #{tpu_custom_call.1} parent=69 // pred_fallthru
              _
            // Predicated region
            $region75: #{tpu_custom_call.1} parent=69 // pred_check
              _
            $region76: #{tpu_custom_call.1} parent=69 // pred_check_branch
              %245 = sbr.rel target = $region78
            $region77: #{tpu_custom_call.1} parent=69 // pred_region
              loop: start=0, step=1, limit=1
              $region79: #{tpu_custom_call.1} parent=77 // loop_pre_header
                _
              $region80: #{tpu_custom_call.1} parent=77 // loop_header
                %s248 = sphi 0, %s252
                %p249 = scmp.ge.s32.totalorder %s248, 1
                %s253 = sphi %s239, %s239
                %s254 = sphi %s234, %s234
              $region81: #{tpu_custom_call.1} parent=77 // loop_header_branch
                %251 = sbr.rel (%p249) target = $region85
              $region82: #{tpu_custom_call.1} parent=77 // loop_body
                %v255 = vld [vmem:[%s253] sm:$0xff]
                %256 = vst [vmem:[%s254] sm:$0xff] %v255
                %v257 = vld [vmem:[%s253 + $0x10] sm:$0xff]
                %258 = vst [vmem:[%s254 + $0x8] sm:$0xff] %v257
                %v259 = vld [vmem:[%s253 + $0x20] sm:$0xff]
                %260 = vst [vmem:[%s254 + $0x10] sm:$0xff] %v259
                %v261 = vld [vmem:[%s253 + $0x30] sm:$0xff]
                %262 = vst [vmem:[%s254 + $0x18] sm:$0xff] %v261
              $region83: #{tpu_custom_call.1} parent=77 // loop_footer
                %s252 = sadd.s32 1, %s248
              $region84: #{tpu_custom_call.1} parent=77 // loop_footer_branch
                %247 = sbr.rel target = $region80
              $region85: #{tpu_custom_call.1} parent=77 // loop_exit
                _
            $region78: #{tpu_custom_call.1} parent=69 // pred_fallthru
              _
          $region70: #{tpu_custom_call.1} parent=65 // pred_fallthru
            _
          %283 = vnop
        $region66: #{tpu_custom_call.1} parent=23 // pred_fallthru
          _
      $region24: #{tpu_custom_call.1} parent=5 // pred_fallthru
        _
      %p284 = scmp.le.s32.totalorder 1, %s11
      %p285 = scmp.lt.s32.totalorder %s11, 3
      %p286 = pnand %p284, %p285
      %p287 = pneg %p286
      // Predicated region
      $region101: #{tpu_custom_call.1} parent=5 // pred_check
        _
      $region102: #{tpu_custom_call.1} parent=5 // pred_check_branch
        %289 = sbr.rel (%p286) target = $region104
      $region103: #{tpu_custom_call.1} parent=5 // pred_region
        %s290 = ssub.s32 %s11, 1
        %s291 = sand.u32 %s38, 1
        %s292 = sand.u32 %s38, 1
        %s293 = smul.addr %s292, 32
        %s294 = scalar_lea.vmem [#allocation4], %s293
        // Predicated region
        $region105: #{tpu_custom_call.1} parent=103 // pred_check
          %p295 = pneg %p51
        $region106: #{tpu_custom_call.1} parent=103 // pred_check_branch
          %297 = sbr.rel (%p295) target = $region108
        $region107: #{tpu_custom_call.1} parent=103 // pred_region
          _
        $region108: #{tpu_custom_call.1} parent=103 // pred_fallthru
          _
        %s298 = sand.u32 %s66, 1
        %s299 = sand.u32 %s66, 1
        %s300 = smul.addr %s299, 32
        %s301 = scalar_lea.vmem [#allocation5], %s300
        // Predicated region
        $region109: #{tpu_custom_call.1} parent=103 // pred_check
          %p302 = pneg %p79
        $region110: #{tpu_custom_call.1} parent=103 // pred_check_branch
          %304 = sbr.rel (%p302) target = $region112
        $region111: #{tpu_custom_call.1} parent=103 // pred_region
          _
        $region112: #{tpu_custom_call.1} parent=103 // pred_fallthru
          _
        %s305 = sand.u32 %s38, 1
        %s306 = sand.u32 %s38, 1
        %s307 = smul.addr %s306, 32
        %s308 = scalar_lea.vmem [#allocation4], %s307
        %p309 = pneg %p51
        %p310 = pneg %p48
        %s311 = sand.u32 %s66, 1
        %s312 = sand.u32 %s66, 1
        %s313 = smul.addr %s312, 32
        %s314 = scalar_lea.vmem [#allocation5], %s313
        %p315 = pneg %p79
        %p316 = pneg %p76
        %p317 = pneg %p100
        %p318 = pneg %p97
        %p319 = pneg %p121
        %p320 = pneg %p118
        %p321 = pneg %p147
        %p322 = pneg %p144
        %s323 = smul.u32 4, %s20
        %s324 = smul.u32 4, %s20
        %p325 = scmp.eq.s32.totalorder %s21, 0
        // Predicated region
        $region113: #{tpu_custom_call.1} parent=103 // pred_check
          %p326 = pneg %p325
        $region114: #{tpu_custom_call.1} parent=103 // pred_check_branch
          %328 = sbr.rel (%p326) target = $region116
        $region115: #{tpu_custom_call.1} parent=103 // pred_region
          %vm329 = vcmask 519168
          %330 = vst.msk [vmem:[#allocation2] sm:$0xf] %vm329, 0.0
          %vm331 = vcmask 3072
          %332 = vst.msk [vmem:[#allocation3] sm:$0xf] %vm331, 0.0
        $region116: #{tpu_custom_call.1} parent=103 // pred_fallthru
          _
        %v333 = vld [vmem:[%s294] sm:$0xff]
        %v334 = vld [vmem:[%s294 + $0x8] sm:$0xff]
        %v335 = vld [vmem:[%s294 + $0x10] sm:$0xff]
        %v336 = vld [vmem:[%s294 + $0x18] sm:$0xff]
        %v337 = vld [vmem:[%s301] sm:$0xff]
        %v338 = vld [vmem:[%s301 + $0x8] sm:$0xff]
        %v339 = vld [vmem:[%s301 + $0x10] sm:$0xff]
        %v340 = vld [vmem:[%s301 + $0x18] sm:$0xff]
        %s341 = smul.u32 %s21, 8
        %v342 = vlaneseq
        %v343 = vshrl.u32 %v342, 7
        %v344 = vstv %s341
        %v345 = vadd.s32 %v344, %v343
        %vm346 = vcmp.lt.s32.totalorder %v345, 14
        %v347 = vsel %vm346, %v337, 0.0
        %v348 = vsel %vm346, %v338, 0.0
        %v349 = vsel %vm346, %v339, 0.0
        %v350 = vsel %vm346, %v340, 0.0
        %vm351 = vcmp.ne.f32.partialorder %v347, 0.0
        %vm352 = vcmp.ne.f32.partialorder %v348, 0.0
        %vm353 = vcmp.ne.f32.partialorder %v349, 0.0
        %vm354 = vcmp.ne.f32.partialorder %v350, 0.0
        %v355 = vsel %vm351, 1, 0
        %v356 = vsel %vm352, 1, 0
        %v357 = vsel %vm353, 1, 0
        %v358 = vsel %vm354, 1, 0
        %359 = vset.pattern.permute.xlu0 0
        %360 = vperm.xlu0 %359, %v355
        %v361 = vpop.permute.xlu0 %360
        %362 = vset.pattern.permute.xlu0 0
        %363 = vperm.xlu0 %362, %v356
        %v364 = vpop.permute.xlu0 %363
        %365 = vset.pattern.permute.xlu0 0
        %366 = vperm.xlu0 %365, %v357
        %v367 = vpop.permute.xlu0 %366
        %368 = vset.pattern.permute.xlu0 0
        %369 = vperm.xlu0 %368, %v358
        %v370 = vpop.permute.xlu0 %369
        %vm371 = vcmp.eq.s32.totalorder %v361, 1
        %vm372 = vcmp.eq.s32.totalorder %v364, 1
        %vm373 = vcmp.eq.s32.totalorder %v367, 1
        %vm374 = vcmp.eq.s32.totalorder %v370, 1
        %v375 = vsel %vm371, %v333, 0.0
        %v376 = vsel %vm372, %v334, 0.0
        %v377 = vsel %vm373, %v335, 0.0
        %v378 = vsel %vm374, %v336, 0.0
        %v379 = vld [vmem:[#allocation2] sm:$0xf]
        %vm380 = vcmask 523264
        %v381 = vsel %vm380, %v375, 0.0
        %v382 = vrot.slane %v381, 4
        %v383 = vadd.f32 %v381, %v382
        %v384 = vrot.slane %v383, 2
        %v385 = vadd.f32 %v383, %v384
        %v386 = vrot.slane %v385, 1
        %v387 = vadd.f32 %v385, %v386
        %v388 = vsel %vm380, %v376, 0.0
        %v389 = vrot.slane %v388, 4
        %v390 = vadd.f32 %v388, %v389
        %v391 = vrot.slane %v390, 2
        %v392 = vadd.f32 %v390, %v391
        %v393 = vrot.slane %v392, 1
        %v394 = vadd.f32 %v392, %v393
        %v395 = vsel %vm380, %v377, 0.0
        %v396 = vrot.slane %v395, 4
        %v397 = vadd.f32 %v395, %v396
        %v398 = vrot.slane %v397, 2
        %v399 = vadd.f32 %v397, %v398
        %v400 = vrot.slane %v399, 1
        %v401 = vadd.f32 %v399, %v400
        %v402 = vsel %vm380, %v378, 0.0
        %v403 = vrot.slane %v402, 4
        %v404 = vadd.f32 %v402, %v403
        %v405 = vrot.slane %v404, 2
        %v406 = vadd.f32 %v404, %v405
        %v407 = vrot.slane %v406, 1
        %v408 = vadd.f32 %v406, %v407
        %vm413 = vcmask 1041409
        %v414 = vsel %vm413, %v394, %v387
        %vm415 = vcmask 1042434
        %v416 = vsel %vm415, %v401, %v414
        %vm417 = vcmask 1043459
        %v418 = vsel %vm417, %v408, %v416
        %v420 = vadd.f32 %v379, %v418
        %vm421 = vcmask 519168
        %422 = vst.msk [vmem:[#allocation2] sm:$0xf] %vm421, %v420
        %v423 = vld [vmem:[#allocation3] sm:$0xf]
        %vm424 = vcmask 7168
        %v425 = vsel %vm424, %v347, 0.0
        %v426 = vrot.slane %v425, 4
        %v427 = vadd.f32 %v425, %v426
        %v428 = vrot.slane %v427, 2
        %v429 = vadd.f32 %v427, %v428
        %v430 = vrot.slane %v429, 1
        %v431 = vadd.f32 %v429, %v430
        %v432 = vsel %vm424, %v348, 0.0
        %v433 = vrot.slane %v432, 4
        %v434 = vadd.f32 %v432, %v433
        %v435 = vrot.slane %v434, 2
        %v436 = vadd.f32 %v434, %v435
        %v437 = vrot.slane %v436, 1
        %v438 = vadd.f32 %v436, %v437
        %v439 = vsel %vm424, %v349, 0.0
        %v440 = vrot.slane %v439, 4
        %v441 = vadd.f32 %v439, %v440
        %v442 = vrot.slane %v441, 2
        %v443 = vadd.f32 %v441, %v442
        %v444 = vrot.slane %v443, 1
        %v445 = vadd.f32 %v443, %v444
        %v446 = vsel %vm424, %v350, 0.0
        %v447 = vrot.slane %v446, 4
        %v448 = vadd.f32 %v446, %v447
        %v449 = vrot.slane %v448, 2
        %v450 = vadd.f32 %v448, %v449
        %v451 = vrot.slane %v450, 1
        %v452 = vadd.f32 %v450, %v451
        %v457 = vsel %vm413, %v438, %v431
        %v458 = vsel %vm415, %v445, %v457
        %v459 = vsel %vm417, %v452, %v458
        %v461 = vadd.f32 %v423, %v459
        %vm462 = vcmask 3072
        %463 = vst.msk [vmem:[#allocation3] sm:$0xf] %vm462, %v461
        %p464 = scmp.eq.s32.totalorder %s21, 1
        // Predicated region
        $region117: #{tpu_custom_call.1} parent=103 // pred_check
          %p465 = pneg %p464
        $region118: #{tpu_custom_call.1} parent=103 // pred_check_branch
          %467 = sbr.rel (%p465) target = $region120
        $region119: #{tpu_custom_call.1} parent=103 // pred_region
          %v468 = vld [vmem:[#allocation2] sm:$0xf]
          %v469 = vld [vmem:[#allocation3] sm:$0xf]
          %471 = vset.pattern.permute.xlu0 0
          %472 = vperm.xlu0 %471, %v469
          %v473 = vpop.permute.xlu0 %472
          %v475 = vrcp.pop %v473
          %v476 = vmul.f32 %v468, %v475
          %v477 = vld [vmem:[%s2] sm:$0xff]
          %v478 = vld [vmem:[%s2 + $0x8] sm:$0xff]
          %v479 = vld [vmem:[%s2 + $0x10] sm:$0xff]
          %v480 = vld [vmem:[%s2 + $0x18] sm:$0xff]
          %v481 = vld [vmem:[%s2 + $0x20] sm:$0xff]
          %v482 = vld [vmem:[%s2 + $0x28] sm:$0xff]
          %v483 = vld [vmem:[%s2 + $0x30] sm:$0xff]
          %v484 = vld [vmem:[%s2 + $0x38] sm:$0xff]
          %v485 = vld [vmem:[%s3] sm:$0x1]
          %v487 = vlaneseq
          %v488 = vshrl.u32 %v487, 7
          %v489 = vsub.s32 0, %v488
          %v490 = vrot.slane %v485, %v489
          %v493 = vsel %vm380, %v476, 0
          %495 = vmatprep.subr.mxu0 0.0
          %496 = vmatpush1.msra.mxu0 %v477
          %497 = vmatprep.subr.mxu0 0.0
          %498 = vmatpush1.msra.mxu0 %v478
          %499 = vmatprep.subr.mxu0 0.0
          %500 = vmatpush1.msra.mxu0 %v479
          %501 = vmatprep.subr.mxu0 0.0
          %502 = vmatpush1.msra.mxu0 %v480
          %503 = vmatprep.subr.mxu0 0.0
          %504 = vmatpush1.msra.mxu0 %v481
          %505 = vmatprep.subr.mxu0 0.0
          %506 = vmatpush1.msra.mxu0 %v482
          %507 = vmatprep.subr.mxu0 0.0
          %508 = vmatpush1.msra.mxu0 %v483
          %509 = vmatprep.subr.mxu0 0.0
          %510 = vmatpush1.msra.mxu0 %v484
          %511 = vmatprep.subr.mxu0 0.0
          %512 = vmatpush1.msra.mxu0 0.0
          %513 = vmatprep.subr.mxu0 0.0
          %514 = vmatpush1.msra.mxu0 0.0
          %515 = vmatprep.subr.mxu0 0.0
          %516 = vmatpush1.msra.mxu0 0.0
          %517 = vmatprep.subr.mxu0 0.0
          %518 = vmatpush1.msra.mxu0 0.0
          %519 = vmatprep.subr.mxu0 0.0
          %520 = vmatpush1.msra.mxu0 0.0
          %521 = vmatprep.subr.mxu0 0.0
          %522 = vmatpush1.msra.mxu0 0.0
          %523 = vmatprep.subr.mxu0 0.0
          %524 = vmatpush1.msra.mxu0 0.0
          %525 = vmatprep.subr.mxu0 0.0
          %526 = vmatpush1.msra.mxu0 0.0
          %527 = vmatprep.subr.mxu0 0.0
          %528 = vmatpush1.msra.mxu0 0.0
          %529 = vmatprep.subr.mxu0 0.0
          %530 = vmatpush1.msra.mxu0 0.0
          %531 = vmatprep.subr.mxu0 0.0
          %532 = vmatpush1.msra.mxu0 0.0
          %533 = vmatprep.subr.mxu0 0.0
          %534 = vmatpush1.msra.mxu0 0.0
          %535 = vmatprep.subr.mxu0 0.0
          %536 = vmatpush1.msra.mxu0 0.0
          %537 = vmatprep.subr.mxu0 0.0
          %538 = vmatpush1.msra.mxu0 0.0
          %539 = vmatprep.subr.mxu0 0.0
          %540 = vmatpush1.msra.mxu0 0.0
          %541 = vmatprep.subr.mxu0 0.0
          %542 = vmatpush1.msra.mxu0 0.0
          %543 = vmatprep.subr.mxu0 0.0
          %544 = vmatpush1.msra.mxu0 0.0
          %545 = vmatprep.subr.mxu0 0.0
          %546 = vmatpush1.msra.mxu0 0.0
          %547 = vmatprep.subr.mxu0 0.0
          %548 = vmatpush1.msra.mxu0 0.0
          %549 = vmatprep.subr.mxu0 0.0
          %550 = vmatpush1.msra.mxu0 0.0
          %551 = vmatprep.subr.mxu0 0.0
          %552 = vmatpush1.msra.mxu0 0.0
          %553 = vmatprep.subr.mxu0 0.0
          %554 = vmatpush1.msra.mxu0 0.0
          %555 = vmatprep.subr.mxu0 0.0
          %556 = vmatpush1.msra.mxu0 0.0
          %557 = vmatprep.subr.mxu0 0.0
          %558 = vmatpush1.msra.mxu0 0.0
          %559 = vmatprep.mubr.f32.mxu0 0.0
          %560 = vmatmul.mubr.f32.gmra.mrb[0].mxu0 %v493
          %v561 = vpop.f32.mrb[0].mxu0
          %v562 = vadd.f32 %v490, %v561
          %v563 = vpop.f32.mrb[0].mxu0
          %564 = vdwg.mxu0
          %v565 = vsub.f32 0.0, %v562
          %v566 = vmul.f32 %v565, 1.442695
          %v567 = vpow.pop %v566
          %v568 = vadd.f32 %v567, 1.0
          %v569 = vrcp.pop %v568
          %v570 = vmul.f32 1.0, %v569
          %571 = vst.msk [vmem:[#allocation6] sm:$0xf] %vm421, %v570
        $region120: #{tpu_custom_call.1} parent=103 // pred_fallthru
          _
        // Predicated region
        $region121: #{tpu_custom_call.1} parent=103 // pred_check
          %p572 = pneg %p144
        $region122: #{tpu_custom_call.1} parent=103 // pred_check_branch
          %574 = sbr.rel (%p572) target = $region124
        $region123: #{tpu_custom_call.1} parent=103 // pred_region
          %s576 = ssub.s32 64, 64
          %577 = vsyncadd [#allocation7], %s576
          %s578 = smul.addr %s20, 64
          %s579 = scalar_lea.hbm %s4, %s578
          %s581 = sshll.u32 [#allocation6], 4
          %s582 = int_to_ptr.vmem [resolvable:$true] %s581
          %584 = dma.vmem_to_hbm [thread:$0]  %s582, 64, %s579, [#allocation7]
        $region124: #{tpu_custom_call.1} parent=103 // pred_fallthru
          _
        // Predicated region
        $region125: #{tpu_custom_call.1} parent=103 // pred_check
          %p585 = pneg %p144
        $region126: #{tpu_custom_call.1} parent=103 // pred_check_branch
          %587 = sbr.rel (%p585) target = $region128
        $region127: #{tpu_custom_call.1} parent=103 // pred_region
          %588 = dma.done [#allocation7], 64
        $region128: #{tpu_custom_call.1} parent=103 // pred_fallthru
          _
      $region104: #{tpu_custom_call.1} parent=5 // pred_fallthru
        _
      %p589 = scmp.le.s32.totalorder 2, %s11
      // Predicated region
      $region129: #{tpu_custom_call.1} parent=5 // pred_check
        %p590 = pneg %p589
      $region130: #{tpu_custom_call.1} parent=5 // pred_check_branch
        %592 = sbr.rel (%p590) target = $region132
      $region131: #{tpu_custom_call.1} parent=5 // pred_region
        %s593 = ssub.s32 %s11, 2
      $region132: #{tpu_custom_call.1} parent=5 // pred_fallthru
        _
    $region6: #{tpu_custom_call.1} parent=1 // loop_footer
      %s15 = sadd.s32 1, %s11
    $region7: #{tpu_custom_call.1} parent=1 // loop_footer_branch
      %10 = sbr.rel target = $region3
    $region8: #{tpu_custom_call.1} parent=1 // loop_exit
      _
    %594 = vsyncpa [#allocation7], 1
    %s595 = scalar_lea.sflag [#allocation7], 1
    %596 = vsyncpa %s595, 1

</llo_original>
